<compile_context>
chip_gen: v5e
topology: v5e:2x2
jax: 0.10.0
libtpu: 0.0.40
codegen_flags: <defaults>
</compile_context>

<pallas_src>
import jax
import jax.numpy as jnp
from jax.experimental import pallas as pl
from jax.experimental.pallas import tpu as pltpu


def mlp_kernel(x_ref, w1_ref, b1_ref, w2_ref, b2_ref, o_ref):
    # x_ref : (TM, F)        F is tiny (2) -> do layer 1 on the VPU
    # w1_ref: (F, H_pad)     b1_ref: (1, H_pad)
    # w2_ref: (H_pad, O_pad) b2_ref: (1, O_pad)
    # o_ref : (TM, O_pad)    lane-dense output (O_pad multiple of 128)
    x = x_ref[...]
    F_ = x_ref.shape[1]

    # Layer 1 (rank-F expansion, VPU): h = sum_f x[:, f] * w1[f, :] + b1
    h = jnp.broadcast_to(b1_ref[...], (x.shape[0], w1_ref.shape[1]))
    for f in range(F_):  # static, tiny (F=2) -> fully unrolled
        h = h + x[:, f : f + 1] * w1_ref[f : f + 1, :]
    h = jnp.maximum(h, 0.0)  # F.relu

    # Layer 2 (H_pad=128 contraction, MXU): y = h @ w2 + b2
    y = jnp.dot(h, w2_ref[...], preferred_element_type=jnp.float32)
    y = y + b2_ref[...]
    o_ref[...] = y.astype(o_ref.dtype)


def net_forward(x, w1, b1, w2, b2, *, tm=128):
    """Pallas implementation of Net.forward.

    x  : (N, F) float32
    w1 : (F, H) float32   (transposed PyTorch hidden.weight)
    b1 : (1, H) float32
    w2 : (H, O) float32   (transposed PyTorch out.weight)
    b2 : (1, O) float32
    returns (N, O) float32
    """
    N, F_ = x.shape
    H = w1.shape[1]
    O = w2.shape[1]

    # Lane-dense padding (multiples of 128) for hidden/output widths,
    # sublane/tile-aligned padding for the batch dim.
    H_pad = pl.cdiv(H, 128) * 128
    O_pad = pl.cdiv(O, 128) * 128
    N_pad = pl.cdiv(N, tm) * tm

    x_p = jnp.pad(x, ((0, N_pad - N), (0, 0)))
    w1_p = jnp.pad(w1, ((0, 0), (0, H_pad - H)))
    b1_p = jnp.pad(b1, ((0, 0), (0, H_pad - H)))
    w2_p = jnp.pad(w2, ((0, H_pad - H), (0, O_pad - O)))
    b2_p = jnp.pad(b2, ((0, 0), (0, O_pad - O)))

    vmem = pltpu.MemorySpace.VMEM
    y_pad = pl.pallas_call(
        mlp_kernel,
        out_shape=jax.ShapeDtypeStruct((N_pad, O_pad), jnp.float32),
        grid=(N_pad // tm,),
        in_specs=[
            pl.BlockSpec((tm, F_), lambda i: (i, 0), memory_space=vmem),
            # Weights/biases: same block every step -> stay resident in VMEM.
            pl.BlockSpec((F_, H_pad), lambda i: (0, 0), memory_space=vmem),
            pl.BlockSpec((1, H_pad), lambda i: (0, 0), memory_space=vmem),
            pl.BlockSpec((H_pad, O_pad), lambda i: (0, 0), memory_space=vmem),
            pl.BlockSpec((1, O_pad), lambda i: (0, 0), memory_space=vmem),
        ],
        out_specs=pl.BlockSpec((tm, O_pad), lambda i: (i, 0), memory_space=vmem),
        compiler_params=pltpu.CompilerParams(
            dimension_semantics=("parallel",),  # v7x: both TCs take half the grid
        ),
    )(x_p, w1_p, b1_p, w2_p, b2_p)

    return y_pad[:N, :O]


def init_params(key, n_feature, n_hidden, n_output):
    """Deterministic init mimicking torch.nn.Linear's U(-1/sqrt(fan_in), 1/sqrt(fan_in))."""
    k1, k2, k3, k4 = jax.random.split(key, 4)
    bound1 = 1.0 / jnp.sqrt(n_feature)
    bound2 = 1.0 / jnp.sqrt(n_hidden)
    w1 = jax.random.uniform(k1, (n_feature, n_hidden), jnp.float32, -bound1, bound1)
    b1 = jax.random.uniform(k2, (1, n_hidden), jnp.float32, -bound1, bound1)
    w2 = jax.random.uniform(k3, (n_hidden, n_output), jnp.float32, -bound2, bound2)
    b2 = jax.random.uniform(k4, (1, n_output), jnp.float32, -bound2, bound2)
    return w1, b1, w2, b2


if __name__ == "__main__":
    key = jax.random.PRNGKey(0)
    k_data0, k_data1, k_params = jax.random.split(key, 3)

    # Mirror the data construction from the original script:
    #   n_data = ones(100, 2); x0 ~ N(+2, 1); x1 ~ N(-2, 1); x = cat -> (200, 2)
    n_per_class = 100
    n_feature, n_hidden, n_output = 2, 10, 2
    base = jnp.ones((n_per_class, n_feature), jnp.float32)
    x0 = 2.0 * base + jax.random.normal(k_data0, (n_per_class, n_feature), jnp.float32)
    x1 = -2.0 * base + jax.random.normal(k_data1, (n_per_class, n_feature), jnp.float32)
    x = jnp.concatenate([x0, x1], axis=0).astype(jnp.float32)  # (200, 2)

    w1, b1, w2, b2 = init_params(k_params, n_feature, n_hidden, n_output)

    y = net_forward(x, w1, b1, w2, b2)
    y = jax.block_until_ready(y)

    # Pure-JAX reference check (same math, outside Pallas).
    y_ref = jnp.maximum(x @ w1 + b1, 0.0) @ w2 + b2
    assert y.shape == (2 * n_per_class, n_output)
    assert jnp.allclose(y, y_ref, atol=1e-4, rtol=1e-4)

    print("KERNEL_OK")
</pallas_src>

<mosaic_0001>
module attributes {stable_mosaic.version = 11 : i64} {
  func.func @mlp_kernel(%arg0: i32, %arg1: memref<128x2xf32, #tpu.memory_space<vmem>>, %arg2: memref<2x128xf32, #tpu.memory_space<vmem>>, %arg3: memref<1x128xf32, #tpu.memory_space<vmem>>, %arg4: memref<128x128xf32, #tpu.memory_space<vmem>>, %arg5: memref<1x128xf32, #tpu.memory_space<vmem>>, %arg6: memref<128x128xf32, #tpu.memory_space<vmem>>) attributes {dimension_semantics = [#tpu.dimension_semantics<parallel>], iteration_bounds = array<i64: 2>, scalar_prefetch = 0 : i64, scratch_operands = 0 : i64, tpu.core_type = #tpu.core_type<tc>, window_params = [{transform_indices = @transform_0, window_bounds = array<i64: 128, 2>}, {pipeline_mode = #tpu.pipeline_mode<synchronous>, transform_indices = @transform_1, window_bounds = array<i64: 2, 128>}, {pipeline_mode = #tpu.pipeline_mode<synchronous>, transform_indices = @transform_2, window_bounds = array<i64: 1, 128>}, {pipeline_mode = #tpu.pipeline_mode<synchronous>, transform_indices = @transform_3, window_bounds = array<i64: 128, 128>}, {pipeline_mode = #tpu.pipeline_mode<synchronous>, transform_indices = @transform_4, window_bounds = array<i64: 1, 128>}, {transform_indices = @transform_5, window_bounds = array<i64: 128, 128>}]} {
    %c0 = arith.constant 0 : index
    %c0_0 = arith.constant 0 : index
    %0 = vector.load %arg1[%c0, %c0_0] : memref<128x2xf32, #tpu.memory_space<vmem>>, vector<128x2xf32>
    %c0_1 = arith.constant 0 : index
    %c0_2 = arith.constant 0 : index
    %1 = vector.load %arg3[%c0_1, %c0_2] : memref<1x128xf32, #tpu.memory_space<vmem>>, vector<1x128xf32>
    %2 = vector.shape_cast %1 : vector<1x128xf32> to vector<1x128xf32>
    %3 = vector.broadcast %2 : vector<1x128xf32> to vector<128x128xf32>
    %4 = vector.extract_strided_slice %0 {offsets = [0, 0], sizes = [128, 1], strides = [1, 1]} : vector<128x2xf32> to vector<128x1xf32>
    %c0_3 = arith.constant 0 : index
    %c0_4 = arith.constant 0 : index
    %5 = vector.load %arg2[%c0_3, %c0_4] : memref<2x128xf32, #tpu.memory_space<vmem>>, vector<1x128xf32>
    %6 = vector.broadcast %4 : vector<128x1xf32> to vector<128x128xf32>
    %7 = vector.broadcast %5 : vector<1x128xf32> to vector<128x128xf32>
    %8 = arith.mulf %6, %7 : vector<128x128xf32>
    %9 = arith.addf %3, %8 : vector<128x128xf32>
    %10 = vector.extract_strided_slice %0 {offsets = [0, 1], sizes = [128, 1], strides = [1, 1]} : vector<128x2xf32> to vector<128x1xf32>
    %c1 = arith.constant 1 : index
    %c0_5 = arith.constant 0 : index
    %11 = vector.load %arg2[%c1, %c0_5] : memref<2x128xf32, #tpu.memory_space<vmem>>, vector<1x128xf32>
    %12 = vector.broadcast %10 : vector<128x1xf32> to vector<128x128xf32>
    %13 = vector.broadcast %11 : vector<1x128xf32> to vector<128x128xf32>
    %14 = arith.mulf %12, %13 : vector<128x128xf32>
    %15 = arith.addf %9, %14 : vector<128x128xf32>
    %cst = arith.constant 0.000000e+00 : f32
    %16 = vector.broadcast %cst : f32 to vector<128x128xf32>
    %17 = arith.maximumf %15, %16 : vector<128x128xf32>
    %c0_6 = arith.constant 0 : index
    %c0_7 = arith.constant 0 : index
    %18 = vector.load %arg4[%c0_6, %c0_7] : memref<128x128xf32, #tpu.memory_space<vmem>>, vector<128x128xf32>
    %cst_8 = arith.constant dense<0.000000e+00> : vector<128x128xf32>
    %19 = tpu.matmul %17, %18, %cst_8 {dimension_numbers = #tpu.dot_dimension_numbers<[1], [0], [0], [1], [0, 0, 1, 1], [], []>} : vector<128x128xf32>, vector<128x128xf32>, vector<128x128xf32> -> vector<128x128xf32>
    %c0_9 = arith.constant 0 : index
    %c0_10 = arith.constant 0 : index
    %20 = vector.load %arg5[%c0_9, %c0_10] : memref<1x128xf32, #tpu.memory_space<vmem>>, vector<1x128xf32>
    %21 = vector.broadcast %20 : vector<1x128xf32> to vector<128x128xf32>
    %22 = arith.addf %19, %21 : vector<128x128xf32>
    %c0_11 = arith.constant 0 : index
    %c0_12 = arith.constant 0 : index
    %23 = vector.load %arg6[%c0_11, %c0_12] : memref<128x128xf32, #tpu.memory_space<vmem>>, vector<128x128xf32>
    tpu.vector_store %arg6[%c0_11, %c0_12], %22 {strides = array<i32>} : memref<128x128xf32, #tpu.memory_space<vmem>>, vector<128x128xf32>,
    return
  }
  func.func @transform_0(%arg0: i32) -> (i32, i32) {
    %c0_i32 = arith.constant 0 : i32
    %c0_i32_0 = arith.constant 0 : i32
    return %arg0, %c0_i32 : i32, i32
  }
  func.func @transform_1(%arg0: i32) -> (i32, i32) {
    %c0_i32 = arith.constant 0 : i32
    %c0_i32_0 = arith.constant 0 : i32
    %c0_i32_1 = arith.constant 0 : i32
    return %c0_i32, %c0_i32_0 : i32, i32
  }
  func.func @transform_2(%arg0: i32) -> (i32, i32) {
    %c0_i32 = arith.constant 0 : i32
    %c0_i32_0 = arith.constant 0 : i32
    %c0_i32_1 = arith.constant 0 : i32
    return %c0_i32, %c0_i32_0 : i32, i32
  }
  func.func @transform_3(%arg0: i32) -> (i32, i32) {
    %c0_i32 = arith.constant 0 : i32
    %c0_i32_0 = arith.constant 0 : i32
    %c0_i32_1 = arith.constant 0 : i32
    return %c0_i32, %c0_i32_0 : i32, i32
  }
  func.func @transform_4(%arg0: i32) -> (i32, i32) {
    %c0_i32 = arith.constant 0 : i32
    %c0_i32_0 = arith.constant 0 : i32
    %c0_i32_1 = arith.constant 0 : i32
    return %c0_i32, %c0_i32_0 : i32, i32
  }
  func.func @transform_5(%arg0: i32) -> (i32, i32) {
    %c0_i32 = arith.constant 0 : i32
    %c0_i32_0 = arith.constant 0 : i32
    return %arg0, %c0_i32 : i32, i32
  }
}

</mosaic_0001>

<llo_original>
// kernel: tpu_custom_call.1
$region0: #{tpu_custom_call.1}
  #allocation0 [shape = 'u32[]', space=smem, size = 0x4, offset = 0x4, fixed_abs, tag = 'smem constant byte address 0x4 - core index']
  #allocation1 [shape = 'u32[72,128]{1,0:T(1,128)}', space=vmem, size = 0x9000, scoped, tag = 'internal scratch']
  %s0 = inlined_call_operand.vmem [shape: f32[256,2], index: 0, kind: input, shape index: {}]
  %s1 = inlined_call_operand.vmem [shape: f32[2,128], index: 1, kind: input, shape index: {}]
  %s2 = inlined_call_operand.vmem [shape: f32[1,128], index: 2, kind: input, shape index: {}]
  %s3 = inlined_call_operand.vmem [shape: f32[128,128], index: 3, kind: input, shape index: {}]
  %s4 = inlined_call_operand.vmem [shape: f32[1,128], index: 4, kind: input, shape index: {}]
  %s5 = inlined_call_operand.hbm [shape: f32[256,128], index: 5, kind: output, shape index: {}]
  %s6 = sld [smem:[#allocation0]]
  $region53: #{tpu_custom_call.1} parent=0
    _
  %s8 = ssub.s32 1, %s6
  %s9 = scalar_select 0, %s8, %s6
  $region1: #{tpu_custom_call.1} parent=0
    #allocation2 [shape = 'u8[131072]{0}', space=vmem, size = 0x20000, scoped, tag = 'output window, operand 0']
    #allocation3 [shape = 's32[2]{0}', space=sflag, size = 0x8, scoped, tag = 'scoped memory for tpu_custom_call.1']
    %10 = vsyncpa [#allocation3], 0
    %s11 = scalar_lea.sflag [#allocation3], 1
    %12 = vsyncpa %s11, 0
    loop: start=0, step=1, limit=4
    $region2: #{tpu_custom_call.1} parent=1 // loop_pre_header
      _
    $region3: #{tpu_custom_call.1} parent=1 // loop_header
      %s14 = sphi 0, %s18
      %p15 = scmp.ge.s32.totalorder %s14, 4
      %s24 = sphi 0, %s26
      %s27 = sphi 0, %s24
      %s28 = sphi 0, %s27
      %s44 = sphi 0, %s28
      %s48 = sphi 0, %s48
      %s50 = sphi 0, %s48
      %s51 = sphi 0, %s50
      %s65 = sphi 0, %s51
      %s69 = sphi 0, %s69
      %s71 = sphi 0, %s69
      %s72 = sphi 0, %s71
      %s86 = sphi 0, %s72
      %s90 = sphi 0, %s90
      %s92 = sphi 0, %s90
      %s93 = sphi 0, %s92
      %s107 = sphi 0, %s93
      %s111 = sphi 0, %s111
      %s113 = sphi 0, %s111
      %s114 = sphi 0, %s113
      %s128 = sphi 0, %s114
      %s134 = sphi 0, %s136
      %s137 = sphi 0, %s134
      %s138 = sphi 0, %s137
      %s154 = sphi 0, %s138
    $region4: #{tpu_custom_call.1} parent=1 // loop_header_branch
      %17 = sbr.rel (%p15) target = $region8
    $region5: #{tpu_custom_call.1} parent=1 // loop_body
      %s19 = ssub.s32 %s14, 1
      %s20 = ssub.s32 %s14, 2
      %s21 = sadd.s32 %s14, 1
      %s22 = ssub.s32 %s14, %s21
      %p23 = scmp.eq.s32.totalorder %s22, 0
      %s25 = sadd.s32 %s24, 1
      %s26 = scalar_select %p23, %s24, %s25
      %p29 = pneg %p23
      %p30 = scmp.eq.s32.totalorder %s14, 1
      %p31 = por %p29, %p30
      %p32 = scmp.ne.s32.totalorder %s24, %s27
      %p33 = scmp.eq.s32.totalorder %s14, 0
      %p34 = por %p32, %p33
      %p35 = scmp.ne.s32.totalorder %s24, %s27
      %p36 = scmp.eq.s32.totalorder %s19, 1
      %p37 = por %p35, %p36
      %p38 = scmp.ne.s32.totalorder %s27, %s28
      %p39 = scmp.eq.s32.totalorder %s19, 0
      %p40 = por %p38, %p39
      %p41 = scmp.ne.s32.totalorder %s27, %s28
      %p42 = scmp.eq.s32.totalorder %s20, 1
      %p43 = por %p41, %p42
      %p45 = scmp.ne.s32.totalorder %s28, %s44
      %p46 = scmp.eq.s32.totalorder %s20, 0
      %p47 = por %p45, %p46
      %s49 = sadd.s32 %s48, 1
      %p52 = scmp.eq.s32.totalorder %s14, 1
      %p53 = scmp.ne.s32.totalorder %s48, %s50
      %p54 = scmp.eq.s32.totalorder %s14, 0
      %p55 = por %p53, %p54
      %p56 = scmp.ne.s32.totalorder %s48, %s50
      %p57 = scmp.eq.s32.totalorder %s19, 1
      %p58 = por %p56, %p57
      %p59 = scmp.ne.s32.totalorder %s50, %s51
      %p60 = scmp.eq.s32.totalorder %s19, 0
      %p61 = por %p59, %p60
      %p62 = scmp.ne.s32.totalorder %s50, %s51
      %p63 = scmp.eq.s32.totalorder %s20, 1
      %p64 = por %p62, %p63
      %p66 = scmp.ne.s32.totalorder %s51, %s65
      %p67 = scmp.eq.s32.totalorder %s20, 0
      %p68 = por %p66, %p67
      %s70 = sadd.s32 %s69, 1
      %p73 = scmp.eq.s32.totalorder %s14, 1
      %p74 = scmp.ne.s32.totalorder %s69, %s71
      %p75 = scmp.eq.s32.totalorder %s14, 0
      %p76 = por %p74, %p75
      %p77 = scmp.ne.s32.totalorder %s69, %s71
      %p78 = scmp.eq.s32.totalorder %s19, 1
      %p79 = por %p77, %p78
      %p80 = scmp.ne.s32.totalorder %s71, %s72
      %p81 = scmp.eq.s32.totalorder %s19, 0
      %p82 = por %p80, %p81
      %p83 = scmp.ne.s32.totalorder %s71, %s72
      %p84 = scmp.eq.s32.totalorder %s20, 1
      %p85 = por %p83, %p84
      %p87 = scmp.ne.s32.totalorder %s72, %s86
      %p88 = scmp.eq.s32.totalorder %s20, 0
      %p89 = por %p87, %p88
      %s91 = sadd.s32 %s90, 1
      %p94 = scmp.eq.s32.totalorder %s14, 1
      %p95 = scmp.ne.s32.totalorder %s90, %s92
      %p96 = scmp.eq.s32.totalorder %s14, 0
      %p97 = por %p95, %p96
      %p98 = scmp.ne.s32.totalorder %s90, %s92
      %p99 = scmp.eq.s32.totalorder %s19, 1
      %p100 = por %p98, %p99
      %p101 = scmp.ne.s32.totalorder %s92, %s93
      %p102 = scmp.eq.s32.totalorder %s19, 0
      %p103 = por %p101, %p102
      %p104 = scmp.ne.s32.totalorder %s92, %s93
      %p105 = scmp.eq.s32.totalorder %s20, 1
      %p106 = por %p104, %p105
      %p108 = scmp.ne.s32.totalorder %s93, %s107
      %p109 = scmp.eq.s32.totalorder %s20, 0
      %p110 = por %p108, %p109
      %s112 = sadd.s32 %s111, 1
      %p115 = scmp.eq.s32.totalorder %s14, 1
      %p116 = scmp.ne.s32.totalorder %s111, %s113
      %p117 = scmp.eq.s32.totalorder %s14, 0
      %p118 = por %p116, %p117
      %p119 = scmp.ne.s32.totalorder %s111, %s113
      %p120 = scmp.eq.s32.totalorder %s19, 1
      %p121 = por %p119, %p120
      %p122 = scmp.ne.s32.totalorder %s113, %s114
      %p123 = scmp.eq.s32.totalorder %s19, 0
      %p124 = por %p122, %p123
      %p125 = scmp.ne.s32.totalorder %s113, %s114
      %p126 = scmp.eq.s32.totalorder %s20, 1
      %p127 = por %p125, %p126
      %p129 = scmp.ne.s32.totalorder %s114, %s128
      %p130 = scmp.eq.s32.totalorder %s20, 0
      %p131 = por %p129, %p130
      %s132 = ssub.s32 %s14, %s21
      %p133 = scmp.eq.s32.totalorder %s132, 0
      %s135 = sadd.s32 %s134, 1
      %s136 = scalar_select %p133, %s134, %s135
      %p139 = pneg %p133
      %p140 = scmp.eq.s32.totalorder %s14, 1
      %p141 = por %p139, %p140
      %p142 = scmp.ne.s32.totalorder %s134, %s137
      %p143 = scmp.eq.s32.totalorder %s14, 0
      %p144 = por %p142, %p143
      %p145 = scmp.ne.s32.totalorder %s134, %s137
      %p146 = scmp.eq.s32.totalorder %s19, 1
      %p147 = por %p145, %p146
      %p148 = scmp.ne.s32.totalorder %s137, %s138
      %p149 = scmp.eq.s32.totalorder %s19, 0
      %p150 = por %p148, %p149
      %p151 = scmp.ne.s32.totalorder %s137, %s138
      %p152 = scmp.eq.s32.totalorder %s20, 1
      %p153 = por %p151, %p152
      %p155 = scmp.ne.s32.totalorder %s138, %s154
      %p156 = scmp.eq.s32.totalorder %s20, 0
      %p157 = por %p155, %p156
      %p158 = scmp.le.s32.totalorder 1, %s14
      %p159 = scmp.lt.s32.totalorder %s14, 3
      %p160 = pnand %p158, %p159
      %p161 = pneg %p160
      // Predicated region
      $region9: #{tpu_custom_call.1} parent=5 // pred_check
        _
      $region10: #{tpu_custom_call.1} parent=5 // pred_check_branch
        %163 = sbr.rel (%p160) target = $region12
      $region11: #{tpu_custom_call.1} parent=5 // pred_region
        %s164 = ssub.s32 %s14, 1
        // Predicated region
        $region13: #{tpu_custom_call.1} parent=11 // pred_check
          %p165 = pneg %p61
        $region14: #{tpu_custom_call.1} parent=11 // pred_check_branch
          %167 = sbr.rel (%p165) target = $region16
        $region15: #{tpu_custom_call.1} parent=11 // pred_region
          _
        $region16: #{tpu_custom_call.1} parent=11 // pred_fallthru
          _
        // Predicated region
        $region17: #{tpu_custom_call.1} parent=11 // pred_check
          %p168 = pneg %p82
        $region18: #{tpu_custom_call.1} parent=11 // pred_check_branch
          %170 = sbr.rel (%p168) target = $region20
        $region19: #{tpu_custom_call.1} parent=11 // pred_region
          _
        $region20: #{tpu_custom_call.1} parent=11 // pred_fallthru
          _
        // Predicated region
        $region21: #{tpu_custom_call.1} parent=11 // pred_check
          %p171 = pneg %p103
        $region22: #{tpu_custom_call.1} parent=11 // pred_check_branch
          %173 = sbr.rel (%p171) target = $region24
        $region23: #{tpu_custom_call.1} parent=11 // pred_region
          _
        $region24: #{tpu_custom_call.1} parent=11 // pred_fallthru
          _
        // Predicated region
        $region25: #{tpu_custom_call.1} parent=11 // pred_check
          %p174 = pneg %p124
        $region26: #{tpu_custom_call.1} parent=11 // pred_check_branch
          %176 = sbr.rel (%p174) target = $region28
        $region27: #{tpu_custom_call.1} parent=11 // pred_region
          _
        $region28: #{tpu_custom_call.1} parent=11 // pred_fallthru
          _
      $region12: #{tpu_custom_call.1} parent=5 // pred_fallthru
        _
      %p177 = scmp.lt.s32.totalorder %s14, 2
      // Predicated region
      $region29: #{tpu_custom_call.1} parent=5 // pred_check
        %p178 = pneg %p177
      $region30: #{tpu_custom_call.1} parent=5 // pred_check_branch
        %180 = sbr.rel (%p178) target = $region32
      $region31: #{tpu_custom_call.1} parent=5 // pred_region
        // Predicated region
        $region33: #{tpu_custom_call.1} parent=31 // pred_check
          %p181 = pneg %p34
        $region34: #{tpu_custom_call.1} parent=31 // pred_check_branch
          %183 = sbr.rel (%p181) target = $region36
        $region35: #{tpu_custom_call.1} parent=31 // pred_region
          %s184 = smul.u32 16, %s14
          %p185 = scmp.lt.s32.totalorder %s184, 31
          %s186 = scalar_select %p185, %s184, 31
          %s187 = smul.addr %s186, 8
          %s188 = scalar_lea.vmem %s0, %s187
          %s189 = smul.u32 16, %s14
        $region36: #{tpu_custom_call.1} parent=31 // pred_fallthru
          _
      $region32: #{tpu_custom_call.1} parent=5 // pred_fallthru
        _
      %p190 = scmp.le.s32.totalorder 1, %s14
      %p191 = scmp.lt.s32.totalorder %s14, 3
      %p192 = pnand %p190, %p191
      %p193 = pneg %p192
      // Predicated region
      $region37: #{tpu_custom_call.1} parent=5 // pred_check
        _
      $region38: #{tpu_custom_call.1} parent=5 // pred_check_branch
        %195 = sbr.rel (%p192) target = $region40
      $region39: #{tpu_custom_call.1} parent=5 // pred_region
        %s196 = ssub.s32 %s14, 1
        %s197 = smul.u32 16, %s19
        %p198 = scmp.lt.s32.totalorder %s197, 31
        %s199 = scalar_select %p198, %s197, 31
        %s200 = smul.addr %s199, 8
        %s201 = scalar_lea.vmem %s0, %s200
        %p202 = pneg %p40
        %p203 = pneg %p37
        %p204 = pneg %p61
        %p205 = pneg %p58
        %p206 = pneg %p82
        %p207 = pneg %p79
        %p208 = pneg %p103
        %p209 = pneg %p100
        %p210 = pneg %p124
        %p211 = pneg %p121
        %p212 = pneg %p150
        %p213 = pneg %p147
        %s214 = sand.u32 %s137, 1
        %s215 = scalar_lea.sflag [#allocation3], %s214
        %s216 = sand.u32 %s137, 1
        %s217 = smul.addr %s216, 128
        %s218 = scalar_lea.vmem [#allocation2], %s217
        %s219 = smul.u32 16, %s19
        %p220 = scmp.lt.s32.totalorder %s219, 31
        %s221 = scalar_select %p220, %s219, 31
        %s222 = smul.addr %s221, 8
        %s223 = scalar_lea.vmem %s0, %s222
        %s224 = smul.u32 16, %s19
        %s225 = smul.u32 16, %s19
        %v226 = vld [vmem:[%s223] sm:$0xff]
        %v227 = vld [vmem:[%s223 + $0x8] sm:$0xff]
        %v228 = vld [vmem:[%s223 + $0x10] sm:$0xff]
        %v229 = vld [vmem:[%s223 + $0x18] sm:$0xff]
        %v230 = vld [vmem:[%s223 + $0x20] sm:$0xff]
        %v231 = vld [vmem:[%s223 + $0x28] sm:$0xff]
        %v232 = vld [vmem:[%s223 + $0x30] sm:$0xff]
        %v233 = vld [vmem:[%s223 + $0x38] sm:$0xff]
        %v234 = vld [vmem:[%s223 + $0x40] sm:$0xff]
        %v235 = vld [vmem:[%s223 + $0x48] sm:$0xff]
        %v236 = vld [vmem:[%s223 + $0x50] sm:$0xff]
        %v237 = vld [vmem:[%s223 + $0x58] sm:$0xff]
        %v238 = vld [vmem:[%s223 + $0x60] sm:$0xff]
        %v239 = vld [vmem:[%s223 + $0x68] sm:$0xff]
        %v240 = vld [vmem:[%s223 + $0x70] sm:$0xff]
        %v241 = vld [vmem:[%s223 + $0x78] sm:$0xff]
        %v242 = vld [vmem:[%s2] sm:$0x1]
        %v244 = vperm.slane %v242, 0
        %v246 = vld [vmem:[%s1] sm:$0x1]
        %248 = vset.pattern.permute.xlu0 0
        %249 = vperm.xlu0 %248, %v226
        %v250 = vpop.permute.xlu0 %249
        %253 = vset.pattern.permute.xlu0 0
        %254 = vperm.xlu0 %253, %v227
        %v255 = vpop.permute.xlu0 %254
        %258 = vset.pattern.permute.xlu0 0
        %259 = vperm.xlu0 %258, %v228
        %v260 = vpop.permute.xlu0 %259
        %263 = vset.pattern.permute.xlu0 0
        %264 = vperm.xlu0 %263, %v229
        %v265 = vpop.permute.xlu0 %264
        %268 = vset.pattern.permute.xlu0 0
        %269 = vperm.xlu0 %268, %v230
        %v270 = vpop.permute.xlu0 %269
        %273 = vset.pattern.permute.xlu0 0
        %274 = vperm.xlu0 %273, %v231
        %v275 = vpop.permute.xlu0 %274
        %278 = vset.pattern.permute.xlu0 0
        %279 = vperm.xlu0 %278, %v232
        %v280 = vpop.permute.xlu0 %279
        %283 = vset.pattern.permute.xlu0 0
        %284 = vperm.xlu0 %283, %v233
        %v285 = vpop.permute.xlu0 %284
        %288 = vset.pattern.permute.xlu0 0
        %289 = vperm.xlu0 %288, %v234
        %v290 = vpop.permute.xlu0 %289
        %293 = vset.pattern.permute.xlu0 0
        %294 = vperm.xlu0 %293, %v235
        %v295 = vpop.permute.xlu0 %294
        %298 = vset.pattern.permute.xlu0 0
        %299 = vperm.xlu0 %298, %v236
        %v300 = vpop.permute.xlu0 %299
        %303 = vset.pattern.permute.xlu0 0
        %304 = vperm.xlu0 %303, %v237
        %v305 = vpop.permute.xlu0 %304
        %308 = vset.pattern.permute.xlu0 0
        %309 = vperm.xlu0 %308, %v238
        %v310 = vpop.permute.xlu0 %309
        %313 = vset.pattern.permute.xlu0 0
        %314 = vperm.xlu0 %313, %v239
        %v315 = vpop.permute.xlu0 %314
        %318 = vset.pattern.permute.xlu0 0
        %319 = vperm.xlu0 %318, %v240
        %v320 = vpop.permute.xlu0 %319
        %323 = vset.pattern.permute.xlu0 0
        %324 = vperm.xlu0 %323, %v241
        %v325 = vpop.permute.xlu0 %324
        %v327 = vperm.slane %v246, 0
        %v328 = vmul.f32 %v250, %v327
        %v329 = vmul.f32 %v255, %v327
        %v330 = vmul.f32 %v260, %v327
        %v331 = vmul.f32 %v265, %v327
        %v332 = vmul.f32 %v270, %v327
        %v333 = vmul.f32 %v275, %v327
        %v334 = vmul.f32 %v280, %v327
        %v335 = vmul.f32 %v285, %v327
        %v336 = vmul.f32 %v290, %v327
        %v337 = vmul.f32 %v295, %v327
        %v338 = vmul.f32 %v300, %v327
        %v339 = vmul.f32 %v305, %v327
        %v340 = vmul.f32 %v310, %v327
        %v341 = vmul.f32 %v315, %v327
        %v342 = vmul.f32 %v320, %v327
        %v343 = vmul.f32 %v325, %v327
        %v344 = vadd.f32 %v244, %v328
        %v345 = vadd.f32 %v244, %v329
        %v346 = vadd.f32 %v244, %v330
        %v347 = vadd.f32 %v244, %v331
        %v348 = vadd.f32 %v244, %v332
        %v349 = vadd.f32 %v244, %v333
        %v350 = vadd.f32 %v244, %v334
        %v351 = vadd.f32 %v244, %v335
        %v352 = vadd.f32 %v244, %v336
        %v353 = vadd.f32 %v244, %v337
        %v354 = vadd.f32 %v244, %v338
        %v355 = vadd.f32 %v244, %v339
        %v356 = vadd.f32 %v244, %v340
        %v357 = vadd.f32 %v244, %v341
        %v358 = vadd.f32 %v244, %v342
        %v359 = vadd.f32 %v244, %v343
        %v360 = vld [vmem:[%s1 + $0x1] sm:$0x1]
        %361 = vset.pattern.permute.xlu0 1
        %362 = vperm.xlu0 %361, %v226
        %v363 = vpop.permute.xlu0 %362
        %365 = vset.pattern.permute.xlu0 1
        %366 = vperm.xlu0 %365, %v227
        %v367 = vpop.permute.xlu0 %366
        %369 = vset.pattern.permute.xlu0 1
        %370 = vperm.xlu0 %369, %v228
        %v371 = vpop.permute.xlu0 %370
        %373 = vset.pattern.permute.xlu0 1
        %374 = vperm.xlu0 %373, %v229
        %v375 = vpop.permute.xlu0 %374
        %377 = vset.pattern.permute.xlu0 1
        %378 = vperm.xlu0 %377, %v230
        %v379 = vpop.permute.xlu0 %378
        %381 = vset.pattern.permute.xlu0 1
        %382 = vperm.xlu0 %381, %v231
        %v383 = vpop.permute.xlu0 %382
        %385 = vset.pattern.permute.xlu0 1
        %386 = vperm.xlu0 %385, %v232
        %v387 = vpop.permute.xlu0 %386
        %389 = vset.pattern.permute.xlu0 1
        %390 = vperm.xlu0 %389, %v233
        %v391 = vpop.permute.xlu0 %390
        %393 = vset.pattern.permute.xlu0 1
        %394 = vperm.xlu0 %393, %v234
        %v395 = vpop.permute.xlu0 %394
        %397 = vset.pattern.permute.xlu0 1
        %398 = vperm.xlu0 %397, %v235
        %v399 = vpop.permute.xlu0 %398
        %401 = vset.pattern.permute.xlu0 1
        %402 = vperm.xlu0 %401, %v236
        %v403 = vpop.permute.xlu0 %402
        %405 = vset.pattern.permute.xlu0 1
        %406 = vperm.xlu0 %405, %v237
        %v407 = vpop.permute.xlu0 %406
        %409 = vset.pattern.permute.xlu0 1
        %410 = vperm.xlu0 %409, %v238
        %v411 = vpop.permute.xlu0 %410
        %413 = vset.pattern.permute.xlu0 1
        %414 = vperm.xlu0 %413, %v239
        %v415 = vpop.permute.xlu0 %414
        %417 = vset.pattern.permute.xlu0 1
        %418 = vperm.xlu0 %417, %v240
        %v419 = vpop.permute.xlu0 %418
        %421 = vset.pattern.permute.xlu0 1
        %422 = vperm.xlu0 %421, %v241
        %v423 = vpop.permute.xlu0 %422
        %v425 = vperm.slane %v360, 0
        %v426 = vmul.f32 %v363, %v425
        %v427 = vmul.f32 %v367, %v425
        %v428 = vmul.f32 %v371, %v425
        %v429 = vmul.f32 %v375, %v425
        %v430 = vmul.f32 %v379, %v425
        %v431 = vmul.f32 %v383, %v425
        %v432 = vmul.f32 %v387, %v425
        %v433 = vmul.f32 %v391, %v425
        %v434 = vmul.f32 %v395, %v425
        %v435 = vmul.f32 %v399, %v425
        %v436 = vmul.f32 %v403, %v425
        %v437 = vmul.f32 %v407, %v425
        %v438 = vmul.f32 %v411, %v425
        %v439 = vmul.f32 %v415, %v425
        %v440 = vmul.f32 %v419, %v425
        %v441 = vmul.f32 %v423, %v425
        %v442 = vadd.f32 %v344, %v426
        %v443 = vadd.f32 %v345, %v427
        %v444 = vadd.f32 %v346, %v428
        %v445 = vadd.f32 %v347, %v429
        %v446 = vadd.f32 %v348, %v430
        %v447 = vadd.f32 %v349, %v431
        %v448 = vadd.f32 %v350, %v432
        %v449 = vadd.f32 %v351, %v433
        %v450 = vadd.f32 %v352, %v434
        %v451 = vadd.f32 %v353, %v435
        %v452 = vadd.f32 %v354, %v436
        %v453 = vadd.f32 %v355, %v437
        %v454 = vadd.f32 %v356, %v438
        %v455 = vadd.f32 %v357, %v439
        %v456 = vadd.f32 %v358, %v440
        %v457 = vadd.f32 %v359, %v441
        %v458 = vmax.f32 %v442, 0.0
        %v459 = vmax.f32 %v443, 0.0
        %v460 = vmax.f32 %v444, 0.0
        %v461 = vmax.f32 %v445, 0.0
        %v462 = vmax.f32 %v446, 0.0
        %v463 = vmax.f32 %v447, 0.0
        %v464 = vmax.f32 %v448, 0.0
        %v465 = vmax.f32 %v449, 0.0
        %v466 = vmax.f32 %v450, 0.0
        %v467 = vmax.f32 %v451, 0.0
        %v468 = vmax.f32 %v452, 0.0
        %v469 = vmax.f32 %v453, 0.0
        %v470 = vmax.f32 %v454, 0.0
        %v471 = vmax.f32 %v455, 0.0
        %v472 = vmax.f32 %v456, 0.0
        %v473 = vmax.f32 %v457, 0.0
        %v474 = vld [vmem:[%s3] sm:$0xff]
        %v475 = vld [vmem:[%s3 + $0x8] sm:$0xff]
        %v476 = vld [vmem:[%s3 + $0x10] sm:$0xff]
        %v477 = vld [vmem:[%s3 + $0x18] sm:$0xff]
        %v478 = vld [vmem:[%s3 + $0x20] sm:$0xff]
        %v479 = vld [vmem:[%s3 + $0x28] sm:$0xff]
        %v480 = vld [vmem:[%s3 + $0x30] sm:$0xff]
        %v481 = vld [vmem:[%s3 + $0x38] sm:$0xff]
        %v482 = vld [vmem:[%s3 + $0x40] sm:$0xff]
        %v483 = vld [vmem:[%s3 + $0x48] sm:$0xff]
        %v484 = vld [vmem:[%s3 + $0x50] sm:$0xff]
        %v485 = vld [vmem:[%s3 + $0x58] sm:$0xff]
        %v486 = vld [vmem:[%s3 + $0x60] sm:$0xff]
        %v487 = vld [vmem:[%s3 + $0x68] sm:$0xff]
        %v488 = vld [vmem:[%s3 + $0x70] sm:$0xff]
        %v489 = vld [vmem:[%s3 + $0x78] sm:$0xff]
        %v490 = vld [vmem:[%s4] sm:$0x1]
        %v492 = vperm.slane %v490, 0
        %494 = vmatpush.msra.mxu0 %v489
        %495 = vmatpush.msra.mxu0 %v488
        %496 = vmatpush.msra.mxu0 %v487
        %497 = vmatpush.msra.mxu0 %v486
        %498 = vmatpush.msra.mxu0 %v485
        %499 = vmatpush.msra.mxu0 %v484
        %500 = vmatpush.msra.mxu0 %v483
        %501 = vmatpush.msra.mxu0 %v482
        %502 = vmatpush.msra.mxu0 %v481
        %503 = vmatpush.msra.mxu0 %v480
        %504 = vmatpush.msra.mxu0 %v479
        %505 = vmatpush.msra.mxu0 %v478
        %506 = vmatpush.msra.mxu0 %v477
        %507 = vmatpush.msra.mxu0 %v476
        %508 = vmatpush.msra.mxu0 %v475
        %509 = vmatpush.msra.mxu0 %v474
        %510 = vmatmul.f32.gmra.mxu0 %v458
        %v511 = vpop.f32.mrf.mxu0
        %v512 = vadd.f32 %v492, %v511
        %513 = vmatmul.f32.gmra.mxu0 %v459
        %v514 = vpop.f32.mrf.mxu0
        %v515 = vadd.f32 %v492, %v514
        %516 = vmatmul.f32.gmra.mxu0 %v460
        %v517 = vpop.f32.mrf.mxu0
        %v518 = vadd.f32 %v492, %v517
        %519 = vmatmul.f32.gmra.mxu0 %v461
        %v520 = vpop.f32.mrf.mxu0
        %v521 = vadd.f32 %v492, %v520
        %522 = vmatmul.f32.gmra.mxu0 %v462
        %v523 = vpop.f32.mrf.mxu0
        %v524 = vadd.f32 %v492, %v523
        %525 = vmatmul.f32.gmra.mxu0 %v463
        %v526 = vpop.f32.mrf.mxu0
        %v527 = vadd.f32 %v492, %v526
        %528 = vmatmul.f32.gmra.mxu0 %v464
        %v529 = vpop.f32.mrf.mxu0
        %v530 = vadd.f32 %v492, %v529
        %531 = vmatmul.f32.gmra.mxu0 %v465
        %v532 = vpop.f32.mrf.mxu0
        %v533 = vadd.f32 %v492, %v532
        %534 = vmatmul.f32.gmra.mxu0 %v466
        %v535 = vpop.f32.mrf.mxu0
        %v536 = vadd.f32 %v492, %v535
        %537 = vmatmul.f32.gmra.mxu0 %v467
        %v538 = vpop.f32.mrf.mxu0
        %v539 = vadd.f32 %v492, %v538
        %540 = vmatmul.f32.gmra.mxu0 %v468
        %v541 = vpop.f32.mrf.mxu0
        %v542 = vadd.f32 %v492, %v541
        %543 = vmatmul.f32.gmra.mxu0 %v469
        %v544 = vpop.f32.mrf.mxu0
        %v545 = vadd.f32 %v492, %v544
        %546 = vmatmul.f32.gmra.mxu0 %v470
        %v547 = vpop.f32.mrf.mxu0
        %v548 = vadd.f32 %v492, %v547
        %549 = vmatmul.f32.gmra.mxu0 %v471
        %v550 = vpop.f32.mrf.mxu0
        %v551 = vadd.f32 %v492, %v550
        %552 = vmatmul.f32.gmra.mxu0 %v472
        %v553 = vpop.f32.mrf.mxu0
        %v554 = vadd.f32 %v492, %v553
        %555 = vmatmul.f32.gmra.mxu0 %v473
        %v556 = vpop.f32.mrf.mxu0
        %v557 = vadd.f32 %v492, %v556
        %558 = vdwg.mxu0
        %559 = vst [vmem:[%s218] sm:$0xff] %v512
        %560 = vst [vmem:[%s218 + $0x8] sm:$0xff] %v515
        %561 = vst [vmem:[%s218 + $0x10] sm:$0xff] %v518
        %562 = vst [vmem:[%s218 + $0x18] sm:$0xff] %v521
        %563 = vst [vmem:[%s218 + $0x20] sm:$0xff] %v524
        %564 = vst [vmem:[%s218 + $0x28] sm:$0xff] %v527
        %565 = vst [vmem:[%s218 + $0x30] sm:$0xff] %v530
        %566 = vst [vmem:[%s218 + $0x38] sm:$0xff] %v533
        %567 = vst [vmem:[%s218 + $0x40] sm:$0xff] %v536
        %568 = vst [vmem:[%s218 + $0x48] sm:$0xff] %v539
        %569 = vst [vmem:[%s218 + $0x50] sm:$0xff] %v542
        %570 = vst [vmem:[%s218 + $0x58] sm:$0xff] %v545
        %571 = vst [vmem:[%s218 + $0x60] sm:$0xff] %v548
        %572 = vst [vmem:[%s218 + $0x68] sm:$0xff] %v551
        %573 = vst [vmem:[%s218 + $0x70] sm:$0xff] %v554
        %574 = vst [vmem:[%s218 + $0x78] sm:$0xff] %v557
        %s575 = sand.u32 %s137, 1
        %s576 = scalar_lea.sflag [#allocation3], %s575
        %s577 = sand.u32 %s137, 1
        %s578 = smul.addr %s577, 128
        %s579 = scalar_lea.vmem [#allocation2], %s578
        // Predicated region
        $region41: #{tpu_custom_call.1} parent=39 // pred_check
          %p580 = pneg %p147
        $region42: #{tpu_custom_call.1} parent=39 // pred_check_branch
          %582 = sbr.rel (%p580) target = $region44
        $region43: #{tpu_custom_call.1} parent=39 // pred_region
          %s583 = smul.u32 16, %s19
          %585 = vsyncadd %s576, 0
          %s586 = smul.addr %s583, 8
          %s587 = scalar_lea.hbm %s5, %s586
          %s588 = sshll.u32 %s579, 4
          %s589 = int_to_ptr.vmem [resolvable:$true] %s588
          %s590 = sshll.u32 %s587, 4
          %s591 = int_to_ptr.hbm [resolvable:$true] %s590
          %596 = dma.vmem_to_hbm [thread:$0]  %s589, 2048, %s591, %s576, 128, 128, 8
        $region44: #{tpu_custom_call.1} parent=39 // pred_fallthru
          _
      $region40: #{tpu_custom_call.1} parent=5 // pred_fallthru
        _
      %p597 = scmp.le.s32.totalorder 2, %s14
      // Predicated region
      $region45: #{tpu_custom_call.1} parent=5 // pred_check
        %p598 = pneg %p597
      $region46: #{tpu_custom_call.1} parent=5 // pred_check_branch
        %600 = sbr.rel (%p598) target = $region48
      $region47: #{tpu_custom_call.1} parent=5 // pred_region
        %s601 = ssub.s32 %s14, 2
        // Predicated region
        $region49: #{tpu_custom_call.1} parent=47 // pred_check
          %p602 = pneg %p153
        $region50: #{tpu_custom_call.1} parent=47 // pred_check_branch
          %604 = sbr.rel (%p602) target = $region52
        $region51: #{tpu_custom_call.1} parent=47 // pred_region
          %s605 = sand.u32 %s138, 1
          %s606 = scalar_lea.sflag [#allocation3], %s605
          %s607 = sand.u32 %s138, 1
          %s608 = smul.addr %s607, 128
          %s609 = scalar_lea.vmem [#allocation2], %s608
          %611 = dma.done %s606, 2048
        $region52: #{tpu_custom_call.1} parent=47 // pred_fallthru
          _
      $region48: #{tpu_custom_call.1} parent=5 // pred_fallthru
        _
    $region6: #{tpu_custom_call.1} parent=1 // loop_footer
      %s18 = sadd.s32 1, %s14
    $region7: #{tpu_custom_call.1} parent=1 // loop_footer_branch
      %13 = sbr.rel target = $region3
    $region8: #{tpu_custom_call.1} parent=1 // loop_exit
      _
    %612 = vsyncpa [#allocation3], 1
    %s613 = scalar_lea.sflag [#allocation3], 1
    %614 = vsyncpa %s613, 1

</llo_original>
